<compile_context>
chip_gen: v6e
topology: v6e:2x2x1
jax: 0.10.0
libtpu: 0.0.40
codegen_flags: <defaults>
</compile_context>

<pallas_src>
import functools

import jax
import jax.numpy as jnp
from jax.experimental import pallas as pl
from jax.experimental.pallas import tpu as pltpu

# ---- problem sizes (BCW branch of split_data) ----
FEATS = 28           # BCW has 28 features
HALF = 14            # args.half
HID_BOT = 20         # bottom-model hidden width
OUT_BOT = 16         # bottom-model output width (per party)
HID_TOP = 20         # top-model hidden width
NUM_CLASSES = 2      # BCW is binary classification
LANE = 128           # lane-dense padded width for all intermediates / output

BATCH = 200          # example batch (not a multiple of 128 -> exercises padding/tiling)
MAX_TILE_B = 512     # cap on rows per grid step


def _round_up(n, m):
    return ((n + m - 1) // m) * m


def _num_tensorcores():
    """2 on v7x (dual TensorCore per chip), else 1.  Conservative on detect failure."""
    try:
        kind = jax.devices()[0].device_kind.lower()
    except Exception:
        return 1
    return 2 if "v7" in kind else 1


def _choose_tile_b(batch):
    """Balanced per-TensorCore tile: 1 step on v5e/v6e, 2 balanced steps on v7x."""
    bp8 = _round_up(max(batch, 1), 8)
    per_core = -(-bp8 // _num_tensorcores())
    return min(MAX_TILE_B, _round_up(per_core, 8))


def _vfl_kernel(x_ref, w1_ref, w_ref, b_ref, out_ref):
    """One batch tile: fused bottom models + (pre-folded) top model, all in VMEM."""
    x = x_ref[...]                                                   # [tile_b, 28]

    # Fused bottom layer 1 (both parties, block-diagonal W1): cols 0:2H real.
    h = jnp.dot(x, w1_ref[...], preferred_element_type=jnp.float32) + b_ref[0:1, :]
    h = jnp.maximum(h, 0.0)                                          # [tile_b, 128]

    # Pre-folded (bottom layer 2 @ top layer 1): h @ w_mid + b_mid, then ReLU.
    ht = jnp.dot(h, w_ref[0], preferred_element_type=jnp.float32) + b_ref[1:2, :]
    ht = jnp.maximum(ht, 0.0)

    # Top output layer.
    logits = jnp.dot(ht, w_ref[1], preferred_element_type=jnp.float32) + b_ref[2:3, :]

    out_ref[...] = logits.astype(out_ref.dtype)                      # lane-dense store


@functools.partial(jax.jit, static_argnames=("tile_b",))
def _vfl_forward_jit(x, packed, *, tile_b):
    b = x.shape[0]
    bp = _round_up(b, tile_b)
    if bp != b:
        x = jnp.pad(x, ((0, bp - b), (0, 0)))

    out = pl.pallas_call(
        _vfl_kernel,
        out_shape=jax.ShapeDtypeStruct((bp, LANE), jnp.float32),
        grid_spec=pltpu.PrefetchScalarGridSpec(
            num_scalar_prefetch=0,
            grid=(bp // tile_b,),
            in_specs=[
                pl.BlockSpec((tile_b, FEATS), lambda i: (i, 0)),     # x tile
                pl.BlockSpec((FEATS, LANE), lambda i: (0, 0)),       # fused W1 (resident)
                pl.BlockSpec((2, LANE, LANE), lambda i: (0, 0, 0)),  # w_mid / wt2 slab
                pl.BlockSpec((3, LANE), lambda i: (0, 0)),           # bias slab
            ],
            out_specs=pl.BlockSpec((tile_b, LANE), lambda i: (i, 0)),
        ),
        compiler_params=pltpu.CompilerParams(
            dimension_semantics=("parallel",),                       # shard batch on v7x
        ),
    )(x, packed["w1"], packed["w_rest"], packed["biases"])

    return out[:b, :NUM_CLASSES]


def vfl_forward(x, packed, *, tile_b=None):
    """Full VflFramework.forward (BCW, use_top_model=True)."""
    if tile_b is None:
        tile_b = _choose_tile_b(x.shape[0])
    return _vfl_forward_jit(x, packed, tile_b=tile_b)


# ---------------------------------------------------------------------------
# Parameter construction / packing
# ---------------------------------------------------------------------------
def init_raw_params(key):
    """Per-layer parameters with the shapes implied by the PyTorch module."""
    ks = jax.random.split(key, 6)

    def lin(k, fan_in, fan_out):
        kw, kb = jax.random.split(k)
        scale = 1.0 / jnp.sqrt(fan_in)
        w = jax.random.uniform(kw, (fan_in, fan_out), jnp.float32, -scale, scale)
        b = jax.random.uniform(kb, (fan_out,), jnp.float32, -scale, scale)
        return w, b

    w1a, b1a = lin(ks[0], HALF, HID_BOT)
    w2a, b2a = lin(ks[1], HID_BOT, OUT_BOT)
    w1b, b1b = lin(ks[2], FEATS - HALF, HID_BOT)
    w2b, b2b = lin(ks[3], HID_BOT, OUT_BOT)
    wt1, bt1 = lin(ks[4], 2 * OUT_BOT, HID_TOP)      # top Linear on concat(out_a, out_b)
    wt2, bt2 = lin(ks[5], HID_TOP, NUM_CLASSES)
    return dict(w1a=w1a, b1a=b1a, w2a=w2a, b2a=b2a,
                w1b=w1b, b1b=b1b, w2b=w2b, b2b=b2b,
                wt1=wt1, bt1=bt1, wt2=wt2, bt2=bt2)


def pack_params(p):
    """Block-diagonal fuse the bottom models, pre-fold w2@wt1, lane-pad everything."""
    # Fused bottom layer 1: [28, 128], block-diagonal in cols 0:2*HID_BOT.
    w1 = jnp.zeros((FEATS, LANE), jnp.float32)
    w1 = w1.at[:HALF, :HID_BOT].set(p["w1a"])
    w1 = w1.at[HALF:FEATS, HID_BOT:2 * HID_BOT].set(p["w1b"])

    # Fused bottom layer 2: [128, 128], block-diagonal in rows 0:2H, cols 0:2D.
    w2 = jnp.zeros((LANE, LANE), jnp.float32)
    w2 = w2.at[:HID_BOT, :OUT_BOT].set(p["w2a"])
    w2 = w2.at[HID_BOT:2 * HID_BOT, OUT_BOT:2 * OUT_BOT].set(p["w2b"])

    # Top weights zero-padded to [128, 128].
    wt1 = jnp.zeros((LANE, LANE), jnp.float32).at[:2 * OUT_BOT, :HID_TOP].set(p["wt1"])
    wt2 = jnp.zeros((LANE, LANE), jnp.float32).at[:HID_TOP, :NUM_CLASSES].set(p["wt2"])

    # Bottom-layer-2 bias as a lane row (cols 0:2D real).
    b2 = jnp.zeros((LANE,), jnp.float32)
    b2 = b2.at[:OUT_BOT].set(p["b2a"]).at[OUT_BOT:2 * OUT_BOT].set(p["b2b"])

    # Pre-fold: no ReLU between bottom-2 and top-1, so
    #   relu((h@w2 + b2)@wt1 + bt1) == relu(h@(w2@wt1) + (b2@wt1 + bt1)).
    w_mid = w2 @ wt1                                        # real block: rows 0:2H, cols 0:HID_TOP
    b_mid = (b2 @ wt1).at[:HID_TOP].add(p["bt1"])           # padded lanes stay exactly zero

    w_rest = jnp.stack([w_mid, wt2])                        # [2, 128, 128]

    # Bias slab: one lane-padded row per remaining layer.
    biases = jnp.zeros((3, LANE), jnp.float32)
    biases = biases.at[0, :HID_BOT].set(p["b1a"])
    biases = biases.at[0, HID_BOT:2 * HID_BOT].set(p["b1b"])
    biases = biases.at[1].set(b_mid)
    biases = biases.at[2, :NUM_CLASSES].set(p["bt2"])

    return dict(w1=w1, w_rest=w_rest, biases=biases)


def vfl_forward_ref(x, p):
    """Pure-JAX reference of the original (un-fused) forward."""
    x_a, x_b = x[:, :HALF], x[:, HALF:FEATS]
    out_a = jnp.maximum(x_a @ p["w1a"] + p["b1a"], 0.0) @ p["w2a"] + p["b2a"]
    out_b = jnp.maximum(x_b @ p["w1b"] + p["b1b"], 0.0) @ p["w2b"] + p["b2b"]
    h = jnp.maximum(jnp.concatenate([out_a, out_b], axis=1) @ p["wt1"] + p["bt1"], 0.0)
    return h @ p["wt2"] + p["bt2"]


if __name__ == "__main__":
    key = jax.random.PRNGKey(0)
    k_x, k_p = jax.random.split(key)
    x = jax.random.normal(k_x, (BATCH, FEATS), jnp.float32)

    raw = init_raw_params(k_p)
    packed = pack_params(raw)

    out = jax.block_until_ready(vfl_forward(x, packed))
    ref = vfl_forward_ref(x, raw)

    assert out.shape == (BATCH, NUM_CLASSES)
    assert jnp.allclose(out, ref, atol=1e-4, rtol=1e-4), "mismatch vs reference"

    # TODO(synk): simulate_train_round_per_batch (optimizers / gradient defenses /
    # backward pass) is training-time logic, not part of forward, and is not implemented.
    print("KERNEL_OK")
</pallas_src>

<mosaic_0001>
module attributes {stable_mosaic.version = 11 : i64} {
  func.func @_vfl_kernel(%arg0: i32, %arg1: memref<200x28xf32, #tpu.memory_space<vmem>>, %arg2: memref<28x128xf32, #tpu.memory_space<vmem>>, %arg3: memref<2x128x128xf32, #tpu.memory_space<vmem>>, %arg4: memref<3x128xf32, #tpu.memory_space<vmem>>, %arg5: memref<200x128xf32, #tpu.memory_space<vmem>>) attributes {dimension_semantics = [#tpu.dimension_semantics<parallel>], iteration_bounds = array<i64: 1>, scalar_prefetch = 0 : i64, scratch_operands = 0 : i64, tpu.core_type = #tpu.core_type<tc>, window_params = [{transform_indices = @transform_0, window_bounds = array<i64: 200, 28>}, {pipeline_mode = #tpu.pipeline_mode<synchronous>, transform_indices = @transform_1, window_bounds = array<i64: 28, 128>}, {pipeline_mode = #tpu.pipeline_mode<synchronous>, transform_indices = @transform_2, window_bounds = array<i64: 2, 128, 128>}, {pipeline_mode = #tpu.pipeline_mode<synchronous>, transform_indices = @transform_3, window_bounds = array<i64: 3, 128>}, {transform_indices = @transform_4, window_bounds = array<i64: 200, 128>}]} {
    %c0 = arith.constant 0 : index
    %c0_0 = arith.constant 0 : index
    %0 = vector.load %arg1[%c0, %c0_0] : memref<200x28xf32, #tpu.memory_space<vmem>>, vector<200x28xf32>
    %c0_1 = arith.constant 0 : index
    %c0_2 = arith.constant 0 : index
    %1 = vector.load %arg2[%c0_1, %c0_2] : memref<28x128xf32, #tpu.memory_space<vmem>>, vector<28x128xf32>
    %cst = arith.constant dense<0.000000e+00> : vector<200x128xf32>
    %2 = tpu.matmul %0, %1, %cst {dimension_numbers = #tpu.dot_dimension_numbers<[1], [0], [0], [1], [0, 0, 1, 1], [], []>} : vector<200x28xf32>, vector<28x128xf32>, vector<200x128xf32> -> vector<200x128xf32>
    %c0_3 = arith.constant 0 : index
    %c0_4 = arith.constant 0 : index
    %3 = vector.load %arg4[%c0_3, %c0_4] : memref<3x128xf32, #tpu.memory_space<vmem>>, vector<1x128xf32>
    %4 = vector.broadcast %3 : vector<1x128xf32> to vector<200x128xf32>
    %5 = arith.addf %2, %4 : vector<200x128xf32>
    %cst_5 = arith.constant 0.000000e+00 : f32
    %6 = vector.broadcast %cst_5 : f32 to vector<200x128xf32>
    %7 = arith.maximumf %5, %6 : vector<200x128xf32>
    %c0_6 = arith.constant 0 : index
    %c0_7 = arith.constant 0 : index
    %c0_8 = arith.constant 0 : index
    %8 = vector.load %arg3[%c0_6, %c0_7, %c0_8] : memref<2x128x128xf32, #tpu.memory_space<vmem>>, vector<1x128x128xf32>
    %9 = vector.shape_cast %8 : vector<1x128x128xf32> to vector<128x128xf32>
    %cst_9 = arith.constant dense<0.000000e+00> : vector<200x128xf32>
    %10 = tpu.matmul %7, %9, %cst_9 {dimension_numbers = #tpu.dot_dimension_numbers<[1], [0], [0], [1], [0, 0, 1, 1], [], []>} : vector<200x128xf32>, vector<128x128xf32>, vector<200x128xf32> -> vector<200x128xf32>
    %c1 = arith.constant 1 : index
    %c0_10 = arith.constant 0 : index
    %11 = vector.load %arg4[%c1, %c0_10] : memref<3x128xf32, #tpu.memory_space<vmem>>, vector<1x128xf32>
    %12 = vector.broadcast %11 : vector<1x128xf32> to vector<200x128xf32>
    %13 = arith.addf %10, %12 : vector<200x128xf32>
    %cst_11 = arith.constant 0.000000e+00 : f32
    %14 = vector.broadcast %cst_11 : f32 to vector<200x128xf32>
    %15 = arith.maximumf %13, %14 : vector<200x128xf32>
    %c1_12 = arith.constant 1 : index
    %c0_13 = arith.constant 0 : index
    %c0_14 = arith.constant 0 : index
    %16 = vector.load %arg3[%c1_12, %c0_13, %c0_14] : memref<2x128x128xf32, #tpu.memory_space<vmem>>, vector<1x128x128xf32>
    %17 = vector.shape_cast %16 : vector<1x128x128xf32> to vector<128x128xf32>
    %cst_15 = arith.constant dense<0.000000e+00> : vector<200x128xf32>
    %18 = tpu.matmul %15, %17, %cst_15 {dimension_numbers = #tpu.dot_dimension_numbers<[1], [0], [0], [1], [0, 0, 1, 1], [], []>} : vector<200x128xf32>, vector<128x128xf32>, vector<200x128xf32> -> vector<200x128xf32>
    %c2 = arith.constant 2 : index
    %c0_16 = arith.constant 0 : index
    %19 = vector.load %arg4[%c2, %c0_16] : memref<3x128xf32, #tpu.memory_space<vmem>>, vector<1x128xf32>
    %20 = vector.broadcast %19 : vector<1x128xf32> to vector<200x128xf32>
    %21 = arith.addf %18, %20 : vector<200x128xf32>
    %c0_17 = arith.constant 0 : index
    %c0_18 = arith.constant 0 : index
    %22 = vector.load %arg5[%c0_17, %c0_18] : memref<200x128xf32, #tpu.memory_space<vmem>>, vector<200x128xf32>
    tpu.vector_store %arg5[%c0_17, %c0_18], %21 {strides = array<i32>} : memref<200x128xf32, #tpu.memory_space<vmem>>, vector<200x128xf32>,
    return
  }
  func.func @transform_0(%arg0: i32) -> (i32, i32) {
    %c0_i32 = arith.constant 0 : i32
    %c0_i32_0 = arith.constant 0 : i32
    return %arg0, %c0_i32 : i32, i32
  }
  func.func @transform_1(%arg0: i32) -> (i32, i32) {
    %c0_i32 = arith.constant 0 : i32
    %c0_i32_0 = arith.constant 0 : i32
    %c0_i32_1 = arith.constant 0 : i32
    return %c0_i32, %c0_i32_0 : i32, i32
  }
  func.func @transform_2(%arg0: i32) -> (i32, i32, i32) {
    %c0_i32 = arith.constant 0 : i32
    %c0_i32_0 = arith.constant 0 : i32
    %c0_i32_1 = arith.constant 0 : i32
    %c0_i32_2 = arith.constant 0 : i32
    return %c0_i32, %c0_i32_0, %c0_i32_1 : i32, i32, i32
  }
  func.func @transform_3(%arg0: i32) -> (i32, i32) {
    %c0_i32 = arith.constant 0 : i32
    %c0_i32_0 = arith.constant 0 : i32
    %c0_i32_1 = arith.constant 0 : i32
    return %c0_i32, %c0_i32_0 : i32, i32
  }
  func.func @transform_4(%arg0: i32) -> (i32, i32) {
    %c0_i32 = arith.constant 0 : i32
    %c0_i32_0 = arith.constant 0 : i32
    return %arg0, %c0_i32 : i32, i32
  }
}

</mosaic_0001>

<llo_original>
// kernel: _vfl_forward_jit.1
$region0: #{_vfl_forward_jit.1}
  #allocation0 [shape = 'u32[]', space=smem, size = 0x4, offset = 0x4, fixed_abs, tag = 'smem constant byte address 0x4 - core index']
  #allocation1 [shape = 'u32[144,128]{1,0:T(1,128)}', space=vmem, size = 0x12000, scoped, tag = 'internal scratch']
  %s0 = inlined_call_operand.vmem [shape: f32[200,28], index: 0, kind: input, shape index: {}]
  %s1 = inlined_call_operand.hbm [shape: f32[28,128], index: 1, kind: input, shape index: {}]
  %s2 = inlined_call_operand.vmem [shape: f32[2,128,128], index: 2, kind: input, shape index: {}]
  %s3 = inlined_call_operand.vmem [shape: f32[3,128], index: 3, kind: input, shape index: {}]
  %s4 = inlined_call_operand.vmem [shape: f32[200,128], index: 4, kind: output, shape index: {}]
  %s5 = sld [smem:[#allocation0]]
  $region30: #{_vfl_forward_jit.1} parent=0
    _
  %s7 = ssub.s32 1, %s5
  %s8 = scalar_select 0, %s7, %s5
  $region1: #{_vfl_forward_jit.1} parent=0
    #allocation2 [shape = 'u8[16384]{0}', space=vmem, size = 0x4000, scoped, tag = 'input window, operand 1, single buffered']
    #allocation3 [shape = 's32[1]{0}', space=sflag, size = 0x4, scoped, tag = 'scoped memory for _vfl_forward_jit.1']
    %9 = vsyncpa [#allocation3], 0
    // Predicated region
    $region2: #{_vfl_forward_jit.1} parent=1 // pred_check
      _
    $region3: #{_vfl_forward_jit.1} parent=1 // pred_check_branch
      %11 = sbr.rel (0) target = $region5
    $region4: #{_vfl_forward_jit.1} parent=1 // pred_region
      _
    $region5: #{_vfl_forward_jit.1} parent=1 // pred_fallthru
      _
    // Predicated region
    $region6: #{_vfl_forward_jit.1} parent=1 // pred_check
      _
    $region7: #{_vfl_forward_jit.1} parent=1 // pred_check_branch
      %13 = sbr.rel (0) target = $region9
    $region8: #{_vfl_forward_jit.1} parent=1 // pred_region
      %s15 = ssub.s32 512, 512
      %16 = vsyncadd [#allocation3], %s15
      %s17 = sshll.u32 [#allocation2], 4
      %s18 = int_to_ptr.vmem [resolvable:$true] %s17
      %23 = dma.hbm_to_vmem [thread:$0]  %s1, 512, %s18, [#allocation3], 128, 128, 8
    $region9: #{_vfl_forward_jit.1} parent=1 // pred_fallthru
      _
    // Predicated region
    $region10: #{_vfl_forward_jit.1} parent=1 // pred_check
      _
    $region11: #{_vfl_forward_jit.1} parent=1 // pred_check_branch
      %25 = sbr.rel (0) target = $region13
    $region12: #{_vfl_forward_jit.1} parent=1 // pred_region
      _
    $region13: #{_vfl_forward_jit.1} parent=1 // pred_fallthru
      _
    // Predicated region
    $region14: #{_vfl_forward_jit.1} parent=1 // pred_check
      _
    $region15: #{_vfl_forward_jit.1} parent=1 // pred_check_branch
      %27 = sbr.rel (0) target = $region17
    $region16: #{_vfl_forward_jit.1} parent=1 // pred_region
      _
    $region17: #{_vfl_forward_jit.1} parent=1 // pred_fallthru
      _
    // Predicated region
    $region18: #{_vfl_forward_jit.1} parent=1 // pred_check
      _
    $region19: #{_vfl_forward_jit.1} parent=1 // pred_check_branch
      %29 = sbr.rel (0) target = $region21
    $region20: #{_vfl_forward_jit.1} parent=1 // pred_region
      %30 = dma.done [#allocation3], 512
    $region21: #{_vfl_forward_jit.1} parent=1 // pred_fallthru
      _
    %v31 = vld [vmem:[%s0] sm:$0xff]
    %v32 = vld [vmem:[%s0 + $0x8] sm:$0xff]
    %v33 = vld [vmem:[%s0 + $0x10] sm:$0xff]
    %v34 = vld [vmem:[%s0 + $0x18] sm:$0xff]
    %v35 = vld [vmem:[%s0 + $0x20] sm:$0xff]
    %v36 = vld [vmem:[%s0 + $0x28] sm:$0xff]
    %v37 = vld [vmem:[%s0 + $0x30] sm:$0xff]
    %v38 = vld [vmem:[%s0 + $0x38] sm:$0xff]
    %v39 = vld [vmem:[%s0 + $0x40] sm:$0xff]
    %v40 = vld [vmem:[%s0 + $0x48] sm:$0xff]
    %v41 = vld [vmem:[%s0 + $0x50] sm:$0xff]
    %v42 = vld [vmem:[%s0 + $0x58] sm:$0xff]
    %v43 = vld [vmem:[%s0 + $0x60] sm:$0xff]
    %v44 = vld [vmem:[%s0 + $0x68] sm:$0xff]
    %v45 = vld [vmem:[%s0 + $0x70] sm:$0xff]
    %v46 = vld [vmem:[%s0 + $0x78] sm:$0xff]
    %v47 = vld [vmem:[%s0 + $0x80] sm:$0xff]
    %v48 = vld [vmem:[%s0 + $0x88] sm:$0xff]
    %v49 = vld [vmem:[%s0 + $0x90] sm:$0xff]
    %v50 = vld [vmem:[%s0 + $0x98] sm:$0xff]
    %v51 = vld [vmem:[%s0 + $0xa0] sm:$0xff]
    %v52 = vld [vmem:[%s0 + $0xa8] sm:$0xff]
    %v53 = vld [vmem:[%s0 + $0xb0] sm:$0xff]
    %v54 = vld [vmem:[%s0 + $0xb8] sm:$0xff]
    %v55 = vld [vmem:[%s0 + $0xc0] sm:$0xff]
    %v56 = vld [vmem:[#allocation2] sm:$0xff]
    %v57 = vld [vmem:[#allocation2 + $0x8] sm:$0xff]
    %v58 = vld [vmem:[#allocation2 + $0x10] sm:$0xff]
    %v59 = vld [vmem:[#allocation2 + $0x18] sm:$0xf]
    %v60 = vld [vmem:[%s3] sm:$0x1]
    %v61 = vlaneseq
    %v62 = vshrl.u32 %v61, 7
    %v63 = vsub.s32 0, %v62
    %v64 = vrot.slane %v60, %v63
    %vm65 = vcmask 228352
    %v67 = vsel %vm65, %v31, 0
    %v70 = vsel %vm65, %v32, 0
    %v73 = vsel %vm65, %v33, 0
    %v76 = vsel %vm65, %v34, 0
    %v79 = vsel %vm65, %v35, 0
    %v82 = vsel %vm65, %v36, 0
    %v85 = vsel %vm65, %v37, 0
    %v88 = vsel %vm65, %v38, 0
    %v91 = vsel %vm65, %v39, 0
    %v94 = vsel %vm65, %v40, 0
    %v97 = vsel %vm65, %v41, 0
    %v100 = vsel %vm65, %v42, 0
    %v103 = vsel %vm65, %v43, 0
    %v106 = vsel %vm65, %v44, 0
    %v109 = vsel %vm65, %v45, 0
    %v112 = vsel %vm65, %v46, 0
    %v115 = vsel %vm65, %v47, 0
    %v118 = vsel %vm65, %v48, 0
    %v121 = vsel %vm65, %v49, 0
    %v124 = vsel %vm65, %v50, 0
    %v127 = vsel %vm65, %v51, 0
    %v130 = vsel %vm65, %v52, 0
    %v133 = vsel %vm65, %v53, 0
    %v136 = vsel %vm65, %v54, 0
    %v139 = vsel %vm65, %v55, 0
    %vm141 = vcmask 1043456
    %v143 = vsel %vm141, %v59, 0
    %145 = vmatprep.subr.mxu0 0.0
    %146 = vmatpush1.msra.mxu0 0.0
    %147 = vmatprep.subr.mxu0 0.0
    %148 = vmatpush1.msra.mxu0 0.0
    %149 = vmatprep.subr.mxu0 0.0
    %150 = vmatpush1.msra.mxu0 0.0
    %151 = vmatprep.subr.mxu0 0.0
    %152 = vmatpush1.msra.mxu0 0.0
    %153 = vmatprep.subr.mxu0 0.0
    %154 = vmatpush1.msra.mxu0 0.0
    %155 = vmatprep.subr.mxu0 0.0
    %156 = vmatpush1.msra.mxu0 0.0
    %157 = vmatprep.subr.mxu0 0.0
    %158 = vmatpush1.msra.mxu0 0.0
    %159 = vmatprep.subr.mxu0 0.0
    %160 = vmatpush1.msra.mxu0 0.0
    %161 = vmatprep.subr.mxu0 0.0
    %162 = vmatpush1.msra.mxu0 0.0
    %163 = vmatprep.subr.mxu0 0.0
    %164 = vmatpush1.msra.mxu0 0.0
    %165 = vmatprep.subr.mxu0 0.0
    %166 = vmatpush1.msra.mxu0 0.0
    %167 = vmatprep.subr.mxu0 0.0
    %168 = vmatpush1.msra.mxu0 0.0
    %169 = vmatprep.subr.mxu0 0.0
    %170 = vmatpush1.msra.mxu0 %v143
    %171 = vmatprep.subr.mxu0 0.0
    %172 = vmatpush1.msra.mxu0 %v58
    %173 = vmatprep.subr.mxu0 0.0
    %174 = vmatpush1.msra.mxu0 %v57
    %175 = vmatprep.subr.mxu0 0.0
    %176 = vmatpush1.msra.mxu0 %v56
    %177 = vmatprep.subr.mxu0 0.0
    %178 = vmatpush2.msra.mxu0 0.0
    %179 = vmatprep.subr.mxu0 0.0
    %180 = vmatpush2.msra.mxu0 0.0
    %181 = vmatprep.subr.mxu0 0.0
    %182 = vmatpush2.msra.mxu0 0.0
    %183 = vmatprep.subr.mxu0 0.0
    %184 = vmatpush2.msra.mxu0 0.0
    %185 = vmatprep.subr.mxu0 0.0
    %186 = vmatpush2.msra.mxu0 0.0
    %187 = vmatprep.subr.mxu0 0.0
    %188 = vmatpush2.msra.mxu0 0.0
    %189 = vmatprep.subr.mxu0 0.0
    %190 = vmatpush2.msra.mxu0 0.0
    %191 = vmatprep.subr.mxu0 0.0
    %192 = vmatpush2.msra.mxu0 0.0
    %193 = vmatprep.subr.mxu0 0.0
    %194 = vmatpush2.msra.mxu0 0.0
    %195 = vmatprep.subr.mxu0 0.0
    %196 = vmatpush2.msra.mxu0 0.0
    %197 = vmatprep.subr.mxu0 0.0
    %198 = vmatpush2.msra.mxu0 0.0
    %199 = vmatprep.subr.mxu0 0.0
    %200 = vmatpush2.msra.mxu0 0.0
    %201 = vmatprep.subr.mxu0 0.0
    %202 = vmatpush2.msra.mxu0 0.0
    %203 = vmatprep.subr.mxu0 0.0
    %204 = vmatpush2.msra.mxu0 0.0
    %205 = vmatprep.subr.mxu0 0.0
    %206 = vmatpush2.msra.mxu0 0.0
    %207 = vmatprep.subr.mxu0 0.0
    %208 = vmatpush2.msra.mxu0 0.0
    %209 = vmatprep.mubr.f32.mxu0 0.0
    %210 = vmatmul.mubr.f32.gmra.mxu0 %v67
    %v211 = vpop.f32.mrf.mxu0
    %v212 = vadd.f32 %v64, %v211
    %v213 = vpop.f32.mrf.mxu0
    %214 = vmatprep.mubr.f32.mxu0 0.0
    %215 = vmatmul.mubr.f32.gmra.mxu0 %v70
    %v216 = vpop.f32.mrf.mxu0
    %v217 = vadd.f32 %v64, %v216
    %v218 = vpop.f32.mrf.mxu0
    %219 = vmatprep.mubr.f32.mxu0 0.0
    %220 = vmatmul.mubr.f32.gmra.mxu0 %v73
    %v221 = vpop.f32.mrf.mxu0
    %v222 = vadd.f32 %v64, %v221
    %v223 = vpop.f32.mrf.mxu0
    %224 = vmatprep.mubr.f32.mxu0 0.0
    %225 = vmatmul.mubr.f32.gmra.mxu0 %v76
    %v226 = vpop.f32.mrf.mxu0
    %v227 = vadd.f32 %v64, %v226
    %v228 = vpop.f32.mrf.mxu0
    %229 = vmatprep.mubr.f32.mxu0 0.0
    %230 = vmatmul.mubr.f32.gmra.mxu0 %v79
    %v231 = vpop.f32.mrf.mxu0
    %v232 = vadd.f32 %v64, %v231
    %v233 = vpop.f32.mrf.mxu0
    %234 = vmatprep.mubr.f32.mxu0 0.0
    %235 = vmatmul.mubr.f32.gmra.mxu0 %v82
    %v236 = vpop.f32.mrf.mxu0
    %v237 = vadd.f32 %v64, %v236
    %v238 = vpop.f32.mrf.mxu0
    %239 = vmatprep.mubr.f32.mxu0 0.0
    %240 = vmatmul.mubr.f32.gmra.mxu0 %v85
    %v241 = vpop.f32.mrf.mxu0
    %v242 = vadd.f32 %v64, %v241
    %v243 = vpop.f32.mrf.mxu0
    %244 = vmatprep.mubr.f32.mxu0 0.0
    %245 = vmatmul.mubr.f32.gmra.mxu0 %v88
    %v246 = vpop.f32.mrf.mxu0
    %v247 = vadd.f32 %v64, %v246
    %v248 = vpop.f32.mrf.mxu0
    %249 = vmatprep.mubr.f32.mxu0 0.0
    %250 = vmatmul.mubr.f32.gmra.mxu0 %v91
    %v251 = vpop.f32.mrf.mxu0
    %v252 = vadd.f32 %v64, %v251
    %v253 = vpop.f32.mrf.mxu0
    %254 = vmatprep.mubr.f32.mxu0 0.0
    %255 = vmatmul.mubr.f32.gmra.mxu0 %v94
    %v256 = vpop.f32.mrf.mxu0
    %v257 = vadd.f32 %v64, %v256
    %v258 = vpop.f32.mrf.mxu0
    %259 = vmatprep.mubr.f32.mxu0 0.0
    %260 = vmatmul.mubr.f32.gmra.mxu0 %v97
    %v261 = vpop.f32.mrf.mxu0
    %v262 = vadd.f32 %v64, %v261
    %v263 = vpop.f32.mrf.mxu0
    %264 = vmatprep.mubr.f32.mxu0 0.0
    %265 = vmatmul.mubr.f32.gmra.mxu0 %v100
    %v266 = vpop.f32.mrf.mxu0
    %v267 = vadd.f32 %v64, %v266
    %v268 = vpop.f32.mrf.mxu0
    %269 = vmatprep.mubr.f32.mxu0 0.0
    %270 = vmatmul.mubr.f32.gmra.mxu0 %v103
    %v271 = vpop.f32.mrf.mxu0
    %v272 = vadd.f32 %v64, %v271
    %v273 = vpop.f32.mrf.mxu0
    %274 = vmatprep.mubr.f32.mxu0 0.0
    %275 = vmatmul.mubr.f32.gmra.mxu0 %v106
    %v276 = vpop.f32.mrf.mxu0
    %v277 = vadd.f32 %v64, %v276
    %v278 = vpop.f32.mrf.mxu0
    %279 = vmatprep.mubr.f32.mxu0 0.0
    %280 = vmatmul.mubr.f32.gmra.mxu0 %v109
    %v281 = vpop.f32.mrf.mxu0
    %v282 = vadd.f32 %v64, %v281
    %v283 = vpop.f32.mrf.mxu0
    %284 = vmatprep.mubr.f32.mxu0 0.0
    %285 = vmatmul.mubr.f32.gmra.mxu0 %v112
    %v286 = vpop.f32.mrf.mxu0
    %v287 = vadd.f32 %v64, %v286
    %v288 = vpop.f32.mrf.mxu0
    %289 = vmatprep.mubr.f32.mxu0 0.0
    %290 = vmatmul.mubr.f32.gmra.mxu0 %v115
    %v291 = vpop.f32.mrf.mxu0
    %v292 = vadd.f32 %v64, %v291
    %v293 = vpop.f32.mrf.mxu0
    %294 = vmatprep.mubr.f32.mxu0 0.0
    %295 = vmatmul.mubr.f32.gmra.mxu0 %v118
    %v296 = vpop.f32.mrf.mxu0
    %v297 = vadd.f32 %v64, %v296
    %v298 = vpop.f32.mrf.mxu0
    %299 = vmatprep.mubr.f32.mxu0 0.0
    %300 = vmatmul.mubr.f32.gmra.mxu0 %v121
    %v301 = vpop.f32.mrf.mxu0
    %v302 = vadd.f32 %v64, %v301
    %v303 = vpop.f32.mrf.mxu0
    %304 = vmatprep.mubr.f32.mxu0 0.0
    %305 = vmatmul.mubr.f32.gmra.mxu0 %v124
    %v306 = vpop.f32.mrf.mxu0
    %v307 = vadd.f32 %v64, %v306
    %v308 = vpop.f32.mrf.mxu0
    %309 = vmatprep.mubr.f32.mxu0 0.0
    %310 = vmatmul.mubr.f32.gmra.mxu0 %v127
    %v311 = vpop.f32.mrf.mxu0
    %v312 = vadd.f32 %v64, %v311
    %v313 = vpop.f32.mrf.mxu0
    %314 = vmatprep.mubr.f32.mxu0 0.0
    %315 = vmatmul.mubr.f32.gmra.mxu0 %v130
    %v316 = vpop.f32.mrf.mxu0
    %v317 = vadd.f32 %v64, %v316
    %v318 = vpop.f32.mrf.mxu0
    %319 = vmatprep.mubr.f32.mxu0 0.0
    %320 = vmatmul.mubr.f32.gmra.mxu0 %v133
    %v321 = vpop.f32.mrf.mxu0
    %v322 = vadd.f32 %v64, %v321
    %v323 = vpop.f32.mrf.mxu0
    %324 = vmatprep.mubr.f32.mxu0 0.0
    %325 = vmatmul.mubr.f32.gmra.mxu0 %v136
    %v326 = vpop.f32.mrf.mxu0
    %v327 = vadd.f32 %v64, %v326
    %v328 = vpop.f32.mrf.mxu0
    %329 = vmatprep.mubr.f32.mxu0 0.0
    %330 = vmatmul.mubr.f32.gmra.mxu0 %v139
    %v331 = vpop.f32.mrf.mxu0
    %v332 = vadd.f32 %v64, %v331
    %v333 = vpop.f32.mrf.mxu0
    %334 = vdwg.mxu0
    %v335 = vmax.f32 %v212, 0.0
    %v336 = vmax.f32 %v217, 0.0
    %v337 = vmax.f32 %v222, 0.0
    %v338 = vmax.f32 %v227, 0.0
    %v339 = vmax.f32 %v232, 0.0
    %v340 = vmax.f32 %v237, 0.0
    %v341 = vmax.f32 %v242, 0.0
    %v342 = vmax.f32 %v247, 0.0
    %v343 = vmax.f32 %v252, 0.0
    %v344 = vmax.f32 %v257, 0.0
    %v345 = vmax.f32 %v262, 0.0
    %v346 = vmax.f32 %v267, 0.0
    %v347 = vmax.f32 %v272, 0.0
    %v348 = vmax.f32 %v277, 0.0
    %v349 = vmax.f32 %v282, 0.0
    %v350 = vmax.f32 %v287, 0.0
    %v351 = vmax.f32 %v292, 0.0
    %v352 = vmax.f32 %v297, 0.0
    %v353 = vmax.f32 %v302, 0.0
    %v354 = vmax.f32 %v307, 0.0
    %v355 = vmax.f32 %v312, 0.0
    %v356 = vmax.f32 %v317, 0.0
    %v357 = vmax.f32 %v322, 0.0
    %v358 = vmax.f32 %v327, 0.0
    %v359 = vmax.f32 %v332, 0.0
    %v360 = vld [vmem:[%s2] sm:$0xff]
    %v361 = vld [vmem:[%s2 + $0x8] sm:$0xff]
    %v362 = vld [vmem:[%s2 + $0x10] sm:$0xff]
    %v363 = vld [vmem:[%s2 + $0x18] sm:$0xff]
    %v364 = vld [vmem:[%s2 + $0x20] sm:$0xff]
    %v365 = vld [vmem:[%s2 + $0x28] sm:$0xff]
    %v366 = vld [vmem:[%s2 + $0x30] sm:$0xff]
    %v367 = vld [vmem:[%s2 + $0x38] sm:$0xff]
    %v368 = vld [vmem:[%s2 + $0x40] sm:$0xff]
    %v369 = vld [vmem:[%s2 + $0x48] sm:$0xff]
    %v370 = vld [vmem:[%s2 + $0x50] sm:$0xff]
    %v371 = vld [vmem:[%s2 + $0x58] sm:$0xff]
    %v372 = vld [vmem:[%s2 + $0x60] sm:$0xff]
    %v373 = vld [vmem:[%s2 + $0x68] sm:$0xff]
    %v374 = vld [vmem:[%s2 + $0x70] sm:$0xff]
    %v375 = vld [vmem:[%s2 + $0x78] sm:$0xff]
    %v376 = vld [vmem:[%s3 + $0x1] sm:$0x1]
    %v377 = vlaneseq
    %v378 = vshrl.u32 %v377, 7
    %v379 = vsub.s32 0, %v378
    %v380 = vrot.slane %v376, %v379
    %381 = vmatprep.subr.mxu0 0.0
    %382 = vmatpush1.msra.mxu0 %v375
    %383 = vmatprep.subr.mxu0 0.0
    %384 = vmatpush1.msra.mxu0 %v374
    %385 = vmatprep.subr.mxu0 0.0
    %386 = vmatpush1.msra.mxu0 %v373
    %387 = vmatprep.subr.mxu0 0.0
    %388 = vmatpush1.msra.mxu0 %v372
    %389 = vmatprep.subr.mxu0 0.0
    %390 = vmatpush1.msra.mxu0 %v371
    %391 = vmatprep.subr.mxu0 0.0
    %392 = vmatpush1.msra.mxu0 %v370
    %393 = vmatprep.subr.mxu0 0.0
    %394 = vmatpush1.msra.mxu0 %v369
    %395 = vmatprep.subr.mxu0 0.0
    %396 = vmatpush1.msra.mxu0 %v368
    %397 = vmatprep.subr.mxu0 0.0
    %398 = vmatpush1.msra.mxu0 %v367
    %399 = vmatprep.subr.mxu0 0.0
    %400 = vmatpush1.msra.mxu0 %v366
    %401 = vmatprep.subr.mxu0 0.0
    %402 = vmatpush1.msra.mxu0 %v365
    %403 = vmatprep.subr.mxu0 0.0
    %404 = vmatpush1.msra.mxu0 %v364
    %405 = vmatprep.subr.mxu0 0.0
    %406 = vmatpush1.msra.mxu0 %v363
    %407 = vmatprep.subr.mxu0 0.0
    %408 = vmatpush1.msra.mxu0 %v362
    %409 = vmatprep.subr.mxu0 0.0
    %410 = vmatpush1.msra.mxu0 %v361
    %411 = vmatprep.subr.mxu0 0.0
    %412 = vmatpush1.msra.mxu0 %v360
    %413 = vmatprep.subr.mxu0 0.0
    %414 = vmatpush2.msra.mxu0 0.0
    %415 = vmatprep.subr.mxu0 0.0
    %416 = vmatpush2.msra.mxu0 0.0
    %417 = vmatprep.subr.mxu0 0.0
    %418 = vmatpush2.msra.mxu0 0.0
    %419 = vmatprep.subr.mxu0 0.0
    %420 = vmatpush2.msra.mxu0 0.0
    %421 = vmatprep.subr.mxu0 0.0
    %422 = vmatpush2.msra.mxu0 0.0
    %423 = vmatprep.subr.mxu0 0.0
    %424 = vmatpush2.msra.mxu0 0.0
    %425 = vmatprep.subr.mxu0 0.0
    %426 = vmatpush2.msra.mxu0 0.0
    %427 = vmatprep.subr.mxu0 0.0
    %428 = vmatpush2.msra.mxu0 0.0
    %429 = vmatprep.subr.mxu0 0.0
    %430 = vmatpush2.msra.mxu0 0.0
    %431 = vmatprep.subr.mxu0 0.0
    %432 = vmatpush2.msra.mxu0 0.0
    %433 = vmatprep.subr.mxu0 0.0
    %434 = vmatpush2.msra.mxu0 0.0
    %435 = vmatprep.subr.mxu0 0.0
    %436 = vmatpush2.msra.mxu0 0.0
    %437 = vmatprep.subr.mxu0 0.0
    %438 = vmatpush2.msra.mxu0 0.0
    %439 = vmatprep.subr.mxu0 0.0
    %440 = vmatpush2.msra.mxu0 0.0
    %441 = vmatprep.subr.mxu0 0.0
    %442 = vmatpush2.msra.mxu0 0.0
    %443 = vmatprep.subr.mxu0 0.0
    %444 = vmatpush2.msra.mxu0 0.0
    %445 = vmatprep.mubr.f32.mxu0 0.0
    %446 = vmatmul.mubr.f32.gmra.mxu0 %v335
    %v447 = vpop.f32.mrf.mxu0
    %v448 = vadd.f32 %v380, %v447
    %v449 = vpop.f32.mrf.mxu0
    %450 = vmatprep.mubr.f32.mxu0 0.0
    %451 = vmatmul.mubr.f32.gmra.mxu0 %v336
    %v452 = vpop.f32.mrf.mxu0
    %v453 = vadd.f32 %v380, %v452
    %v454 = vpop.f32.mrf.mxu0
    %455 = vmatprep.mubr.f32.mxu0 0.0
    %456 = vmatmul.mubr.f32.gmra.mxu0 %v337
    %v457 = vpop.f32.mrf.mxu0
    %v458 = vadd.f32 %v380, %v457
    %v459 = vpop.f32.mrf.mxu0
    %460 = vmatprep.mubr.f32.mxu0 0.0
    %461 = vmatmul.mubr.f32.gmra.mxu0 %v338
    %v462 = vpop.f32.mrf.mxu0
    %v463 = vadd.f32 %v380, %v462
    %v464 = vpop.f32.mrf.mxu0
    %465 = vmatprep.mubr.f32.mxu0 0.0
    %466 = vmatmul.mubr.f32.gmra.mxu0 %v339
    %v467 = vpop.f32.mrf.mxu0
    %v468 = vadd.f32 %v380, %v467
    %v469 = vpop.f32.mrf.mxu0
    %470 = vmatprep.mubr.f32.mxu0 0.0
    %471 = vmatmul.mubr.f32.gmra.mxu0 %v340
    %v472 = vpop.f32.mrf.mxu0
    %v473 = vadd.f32 %v380, %v472
    %v474 = vpop.f32.mrf.mxu0
    %475 = vmatprep.mubr.f32.mxu0 0.0
    %476 = vmatmul.mubr.f32.gmra.mxu0 %v341
    %v477 = vpop.f32.mrf.mxu0
    %v478 = vadd.f32 %v380, %v477
    %v479 = vpop.f32.mrf.mxu0
    %480 = vmatprep.mubr.f32.mxu0 0.0
    %481 = vmatmul.mubr.f32.gmra.mxu0 %v342
    %v482 = vpop.f32.mrf.mxu0
    %v483 = vadd.f32 %v380, %v482
    %v484 = vpop.f32.mrf.mxu0
    %485 = vmatprep.mubr.f32.mxu0 0.0
    %486 = vmatmul.mubr.f32.gmra.mxu0 %v343
    %v487 = vpop.f32.mrf.mxu0
    %v488 = vadd.f32 %v380, %v487
    %v489 = vpop.f32.mrf.mxu0
    %490 = vmatprep.mubr.f32.mxu0 0.0
    %491 = vmatmul.mubr.f32.gmra.mxu0 %v344
    %v492 = vpop.f32.mrf.mxu0
    %v493 = vadd.f32 %v380, %v492
    %v494 = vpop.f32.mrf.mxu0
    %495 = vmatprep.mubr.f32.mxu0 0.0
    %496 = vmatmul.mubr.f32.gmra.mxu0 %v345
    %v497 = vpop.f32.mrf.mxu0
    %v498 = vadd.f32 %v380, %v497
    %v499 = vpop.f32.mrf.mxu0
    %500 = vmatprep.mubr.f32.mxu0 0.0
    %501 = vmatmul.mubr.f32.gmra.mxu0 %v346
    %v502 = vpop.f32.mrf.mxu0
    %v503 = vadd.f32 %v380, %v502
    %v504 = vpop.f32.mrf.mxu0
    %505 = vmatprep.mubr.f32.mxu0 0.0
    %506 = vmatmul.mubr.f32.gmra.mxu0 %v347
    %v507 = vpop.f32.mrf.mxu0
    %v508 = vadd.f32 %v380, %v507
    %v509 = vpop.f32.mrf.mxu0
    %510 = vmatprep.mubr.f32.mxu0 0.0
    %511 = vmatmul.mubr.f32.gmra.mxu0 %v348
    %v512 = vpop.f32.mrf.mxu0
    %v513 = vadd.f32 %v380, %v512
    %v514 = vpop.f32.mrf.mxu0
    %515 = vmatprep.mubr.f32.mxu0 0.0
    %516 = vmatmul.mubr.f32.gmra.mxu0 %v349
    %v517 = vpop.f32.mrf.mxu0
    %v518 = vadd.f32 %v380, %v517
    %v519 = vpop.f32.mrf.mxu0
    %520 = vmatprep.mubr.f32.mxu0 0.0
    %521 = vmatmul.mubr.f32.gmra.mxu0 %v350
    %v522 = vpop.f32.mrf.mxu0
    %v523 = vadd.f32 %v380, %v522
    %v524 = vpop.f32.mrf.mxu0
    %525 = vmatprep.mubr.f32.mxu0 0.0
    %526 = vmatmul.mubr.f32.gmra.mxu0 %v351
    %v527 = vpop.f32.mrf.mxu0
    %v528 = vadd.f32 %v380, %v527
    %v529 = vpop.f32.mrf.mxu0
    %530 = vmatprep.mubr.f32.mxu0 0.0
    %531 = vmatmul.mubr.f32.gmra.mxu0 %v352
    %v532 = vpop.f32.mrf.mxu0
    %v533 = vadd.f32 %v380, %v532
    %v534 = vpop.f32.mrf.mxu0
    %535 = vmatprep.mubr.f32.mxu0 0.0
    %536 = vmatmul.mubr.f32.gmra.mxu0 %v353
    %v537 = vpop.f32.mrf.mxu0
    %v538 = vadd.f32 %v380, %v537
    %v539 = vpop.f32.mrf.mxu0
    %540 = vmatprep.mubr.f32.mxu0 0.0
    %541 = vmatmul.mubr.f32.gmra.mxu0 %v354
    %v542 = vpop.f32.mrf.mxu0
    %v543 = vadd.f32 %v380, %v542
    %v544 = vpop.f32.mrf.mxu0
    %545 = vmatprep.mubr.f32.mxu0 0.0
    %546 = vmatmul.mubr.f32.gmra.mxu0 %v355
    %v547 = vpop.f32.mrf.mxu0
    %v548 = vadd.f32 %v380, %v547
    %v549 = vpop.f32.mrf.mxu0
    %550 = vmatprep.mubr.f32.mxu0 0.0
    %551 = vmatmul.mubr.f32.gmra.mxu0 %v356
    %v552 = vpop.f32.mrf.mxu0
    %v553 = vadd.f32 %v380, %v552
    %v554 = vpop.f32.mrf.mxu0
    %555 = vmatprep.mubr.f32.mxu0 0.0
    %556 = vmatmul.mubr.f32.gmra.mxu0 %v357
    %v557 = vpop.f32.mrf.mxu0
    %v558 = vadd.f32 %v380, %v557
    %v559 = vpop.f32.mrf.mxu0
    %560 = vmatprep.mubr.f32.mxu0 0.0
    %561 = vmatmul.mubr.f32.gmra.mxu0 %v358
    %v562 = vpop.f32.mrf.mxu0
    %v563 = vadd.f32 %v380, %v562
    %v564 = vpop.f32.mrf.mxu0
    %565 = vmatprep.mubr.f32.mxu0 0.0
    %566 = vmatmul.mubr.f32.gmra.mxu0 %v359
    %v567 = vpop.f32.mrf.mxu0
    %v568 = vadd.f32 %v380, %v567
    %v569 = vpop.f32.mrf.mxu0
    %570 = vdwg.mxu0
    %v571 = vmax.f32 %v448, 0.0
    %v572 = vmax.f32 %v453, 0.0
    %v573 = vmax.f32 %v458, 0.0
    %v574 = vmax.f32 %v463, 0.0
    %v575 = vmax.f32 %v468, 0.0
    %v576 = vmax.f32 %v473, 0.0
    %v577 = vmax.f32 %v478, 0.0
    %v578 = vmax.f32 %v483, 0.0
    %v579 = vmax.f32 %v488, 0.0
    %v580 = vmax.f32 %v493, 0.0
    %v581 = vmax.f32 %v498, 0.0
    %v582 = vmax.f32 %v503, 0.0
    %v583 = vmax.f32 %v508, 0.0
    %v584 = vmax.f32 %v513, 0.0
    %v585 = vmax.f32 %v518, 0.0
    %v586 = vmax.f32 %v523, 0.0
    %v587 = vmax.f32 %v528, 0.0
    %v588 = vmax.f32 %v533, 0.0
    %v589 = vmax.f32 %v538, 0.0
    %v590 = vmax.f32 %v543, 0.0
    %v591 = vmax.f32 %v548, 0.0
    %v592 = vmax.f32 %v553, 0.0
    %v593 = vmax.f32 %v558, 0.0
    %v594 = vmax.f32 %v563, 0.0
    %v595 = vmax.f32 %v568, 0.0
    %s596 = scalar_lea.vmem %s2, 128
    %v597 = vld [vmem:[%s596] sm:$0xff]
    %v598 = vld [vmem:[%s596 + $0x8] sm:$0xff]
    %v599 = vld [vmem:[%s596 + $0x10] sm:$0xff]
    %v600 = vld [vmem:[%s596 + $0x18] sm:$0xff]
    %v601 = vld [vmem:[%s596 + $0x20] sm:$0xff]
    %v602 = vld [vmem:[%s596 + $0x28] sm:$0xff]
    %v603 = vld [vmem:[%s596 + $0x30] sm:$0xff]
    %v604 = vld [vmem:[%s596 + $0x38] sm:$0xff]
    %v605 = vld [vmem:[%s596 + $0x40] sm:$0xff]
    %v606 = vld [vmem:[%s596 + $0x48] sm:$0xff]
    %v607 = vld [vmem:[%s596 + $0x50] sm:$0xff]
    %v608 = vld [vmem:[%s596 + $0x58] sm:$0xff]
    %v609 = vld [vmem:[%s596 + $0x60] sm:$0xff]
    %v610 = vld [vmem:[%s596 + $0x68] sm:$0xff]
    %v611 = vld [vmem:[%s596 + $0x70] sm:$0xff]
    %v612 = vld [vmem:[%s596 + $0x78] sm:$0xff]
    %v613 = vld [vmem:[%s3 + $0x2] sm:$0x1]
    %v614 = vlaneseq
    %v615 = vshrl.u32 %v614, 7
    %v616 = vsub.s32 0, %v615
    %v617 = vrot.slane %v613, %v616
    %618 = vmatprep.subr.mxu0 0.0
    %619 = vmatpush1.msra.mxu0 %v612
    %620 = vmatprep.subr.mxu0 0.0
    %621 = vmatpush1.msra.mxu0 %v611
    %622 = vmatprep.subr.mxu0 0.0
    %623 = vmatpush1.msra.mxu0 %v610
    %624 = vmatprep.subr.mxu0 0.0
    %625 = vmatpush1.msra.mxu0 %v609
    %626 = vmatprep.subr.mxu0 0.0
    %627 = vmatpush1.msra.mxu0 %v608
    %628 = vmatprep.subr.mxu0 0.0
    %629 = vmatpush1.msra.mxu0 %v607
    %630 = vmatprep.subr.mxu0 0.0
    %631 = vmatpush1.msra.mxu0 %v606
    %632 = vmatprep.subr.mxu0 0.0
    %633 = vmatpush1.msra.mxu0 %v605
    %634 = vmatprep.subr.mxu0 0.0
    %635 = vmatpush1.msra.mxu0 %v604
    %636 = vmatprep.subr.mxu0 0.0
    %637 = vmatpush1.msra.mxu0 %v603
    %638 = vmatprep.subr.mxu0 0.0
    %639 = vmatpush1.msra.mxu0 %v602
    %640 = vmatprep.subr.mxu0 0.0
    %641 = vmatpush1.msra.mxu0 %v601
    %642 = vmatprep.subr.mxu0 0.0
    %643 = vmatpush1.msra.mxu0 %v600
    %644 = vmatprep.subr.mxu0 0.0
    %645 = vmatpush1.msra.mxu0 %v599
    %646 = vmatprep.subr.mxu0 0.0
    %647 = vmatpush1.msra.mxu0 %v598
    %648 = vmatprep.subr.mxu0 0.0
    %649 = vmatpush1.msra.mxu0 %v597
    %650 = vmatprep.subr.mxu0 0.0
    %651 = vmatpush2.msra.mxu0 0.0
    %652 = vmatprep.subr.mxu0 0.0
    %653 = vmatpush2.msra.mxu0 0.0
    %654 = vmatprep.subr.mxu0 0.0
    %655 = vmatpush2.msra.mxu0 0.0
    %656 = vmatprep.subr.mxu0 0.0
    %657 = vmatpush2.msra.mxu0 0.0
    %658 = vmatprep.subr.mxu0 0.0
    %659 = vmatpush2.msra.mxu0 0.0
    %660 = vmatprep.subr.mxu0 0.0
    %661 = vmatpush2.msra.mxu0 0.0
    %662 = vmatprep.subr.mxu0 0.0
    %663 = vmatpush2.msra.mxu0 0.0
    %664 = vmatprep.subr.mxu0 0.0
    %665 = vmatpush2.msra.mxu0 0.0
    %666 = vmatprep.subr.mxu0 0.0
    %667 = vmatpush2.msra.mxu0 0.0
    %668 = vmatprep.subr.mxu0 0.0
    %669 = vmatpush2.msra.mxu0 0.0
    %670 = vmatprep.subr.mxu0 0.0
    %671 = vmatpush2.msra.mxu0 0.0
    %672 = vmatprep.subr.mxu0 0.0
    %673 = vmatpush2.msra.mxu0 0.0
    %674 = vmatprep.subr.mxu0 0.0
    %675 = vmatpush2.msra.mxu0 0.0
    %676 = vmatprep.subr.mxu0 0.0
    %677 = vmatpush2.msra.mxu0 0.0
    %678 = vmatprep.subr.mxu0 0.0
    %679 = vmatpush2.msra.mxu0 0.0
    %680 = vmatprep.subr.mxu0 0.0
    %681 = vmatpush2.msra.mxu0 0.0
    %682 = vmatprep.mubr.f32.mxu0 0.0
    %683 = vmatmul.mubr.f32.gmra.mxu0 %v571
    %v684 = vpop.f32.mrf.mxu0
    %v685 = vadd.f32 %v617, %v684
    %v686 = vpop.f32.mrf.mxu0
    %687 = vmatprep.mubr.f32.mxu0 0.0
    %688 = vmatmul.mubr.f32.gmra.mxu0 %v572
    %v689 = vpop.f32.mrf.mxu0
    %v690 = vadd.f32 %v617, %v689
    %v691 = vpop.f32.mrf.mxu0
    %692 = vmatprep.mubr.f32.mxu0 0.0
    %693 = vmatmul.mubr.f32.gmra.mxu0 %v573
    %v694 = vpop.f32.mrf.mxu0
    %v695 = vadd.f32 %v617, %v694
    %v696 = vpop.f32.mrf.mxu0
    %697 = vmatprep.mubr.f32.mxu0 0.0
    %698 = vmatmul.mubr.f32.gmra.mxu0 %v574
    %v699 = vpop.f32.mrf.mxu0
    %v700 = vadd.f32 %v617, %v699
    %v701 = vpop.f32.mrf.mxu0
    %702 = vmatprep.mubr.f32.mxu0 0.0
    %703 = vmatmul.mubr.f32.gmra.mxu0 %v575
    %v704 = vpop.f32.mrf.mxu0
    %v705 = vadd.f32 %v617, %v704
    %v706 = vpop.f32.mrf.mxu0
    %707 = vmatprep.mubr.f32.mxu0 0.0
    %708 = vmatmul.mubr.f32.gmra.mxu0 %v576
    %v709 = vpop.f32.mrf.mxu0
    %v710 = vadd.f32 %v617, %v709
    %v711 = vpop.f32.mrf.mxu0
    %712 = vmatprep.mubr.f32.mxu0 0.0
    %713 = vmatmul.mubr.f32.gmra.mxu0 %v577
    %v714 = vpop.f32.mrf.mxu0
    %v715 = vadd.f32 %v617, %v714
    %v716 = vpop.f32.mrf.mxu0
    %717 = vmatprep.mubr.f32.mxu0 0.0
    %718 = vmatmul.mubr.f32.gmra.mxu0 %v578
    %v719 = vpop.f32.mrf.mxu0
    %v720 = vadd.f32 %v617, %v719
    %v721 = vpop.f32.mrf.mxu0
    %722 = vmatprep.mubr.f32.mxu0 0.0
    %723 = vmatmul.mubr.f32.gmra.mxu0 %v579
    %v724 = vpop.f32.mrf.mxu0
    %v725 = vadd.f32 %v617, %v724
    %v726 = vpop.f32.mrf.mxu0
    %727 = vmatprep.mubr.f32.mxu0 0.0
    %728 = vmatmul.mubr.f32.gmra.mxu0 %v580
    %v729 = vpop.f32.mrf.mxu0
    %v730 = vadd.f32 %v617, %v729
    %v731 = vpop.f32.mrf.mxu0
    %732 = vmatprep.mubr.f32.mxu0 0.0
    %733 = vmatmul.mubr.f32.gmra.mxu0 %v581
    %v734 = vpop.f32.mrf.mxu0
    %v735 = vadd.f32 %v617, %v734
    %v736 = vpop.f32.mrf.mxu0
    %737 = vmatprep.mubr.f32.mxu0 0.0
    %738 = vmatmul.mubr.f32.gmra.mxu0 %v582
    %v739 = vpop.f32.mrf.mxu0
    %v740 = vadd.f32 %v617, %v739
    %v741 = vpop.f32.mrf.mxu0
    %742 = vmatprep.mubr.f32.mxu0 0.0
    %743 = vmatmul.mubr.f32.gmra.mxu0 %v583
    %v744 = vpop.f32.mrf.mxu0
    %v745 = vadd.f32 %v617, %v744
    %v746 = vpop.f32.mrf.mxu0
    %747 = vmatprep.mubr.f32.mxu0 0.0
    %748 = vmatmul.mubr.f32.gmra.mxu0 %v584
    %v749 = vpop.f32.mrf.mxu0
    %v750 = vadd.f32 %v617, %v749
    %v751 = vpop.f32.mrf.mxu0
    %752 = vmatprep.mubr.f32.mxu0 0.0
    %753 = vmatmul.mubr.f32.gmra.mxu0 %v585
    %v754 = vpop.f32.mrf.mxu0
    %v755 = vadd.f32 %v617, %v754
    %v756 = vpop.f32.mrf.mxu0
    %757 = vmatprep.mubr.f32.mxu0 0.0
    %758 = vmatmul.mubr.f32.gmra.mxu0 %v586
    %v759 = vpop.f32.mrf.mxu0
    %v760 = vadd.f32 %v617, %v759
    %v761 = vpop.f32.mrf.mxu0
    %762 = vmatprep.mubr.f32.mxu0 0.0
    %763 = vmatmul.mubr.f32.gmra.mxu0 %v587
    %v764 = vpop.f32.mrf.mxu0
    %v765 = vadd.f32 %v617, %v764
    %v766 = vpop.f32.mrf.mxu0
    %767 = vmatprep.mubr.f32.mxu0 0.0
    %768 = vmatmul.mubr.f32.gmra.mxu0 %v588
    %v769 = vpop.f32.mrf.mxu0
    %v770 = vadd.f32 %v617, %v769
    %v771 = vpop.f32.mrf.mxu0
    %772 = vmatprep.mubr.f32.mxu0 0.0
    %773 = vmatmul.mubr.f32.gmra.mxu0 %v589
    %v774 = vpop.f32.mrf.mxu0
    %v775 = vadd.f32 %v617, %v774
    %v776 = vpop.f32.mrf.mxu0
    %777 = vmatprep.mubr.f32.mxu0 0.0
    %778 = vmatmul.mubr.f32.gmra.mxu0 %v590
    %v779 = vpop.f32.mrf.mxu0
    %v780 = vadd.f32 %v617, %v779
    %v781 = vpop.f32.mrf.mxu0
    %782 = vmatprep.mubr.f32.mxu0 0.0
    %783 = vmatmul.mubr.f32.gmra.mxu0 %v591
    %v784 = vpop.f32.mrf.mxu0
    %v785 = vadd.f32 %v617, %v784
    %v786 = vpop.f32.mrf.mxu0
    %787 = vmatprep.mubr.f32.mxu0 0.0
    %788 = vmatmul.mubr.f32.gmra.mxu0 %v592
    %v789 = vpop.f32.mrf.mxu0
    %v790 = vadd.f32 %v617, %v789
    %v791 = vpop.f32.mrf.mxu0
    %792 = vmatprep.mubr.f32.mxu0 0.0
    %793 = vmatmul.mubr.f32.gmra.mxu0 %v593
    %v794 = vpop.f32.mrf.mxu0
    %v795 = vadd.f32 %v617, %v794
    %v796 = vpop.f32.mrf.mxu0
    %797 = vmatprep.mubr.f32.mxu0 0.0
    %798 = vmatmul.mubr.f32.gmra.mxu0 %v594
    %v799 = vpop.f32.mrf.mxu0
    %v800 = vadd.f32 %v617, %v799
    %v801 = vpop.f32.mrf.mxu0
    %802 = vmatprep.mubr.f32.mxu0 0.0
    %803 = vmatmul.mubr.f32.gmra.mxu0 %v595
    %v804 = vpop.f32.mrf.mxu0
    %v805 = vadd.f32 %v617, %v804
    %v806 = vpop.f32.mrf.mxu0
    %807 = vdwg.mxu0
    %808 = vst [vmem:[%s4] sm:$0xff] %v685
    %809 = vst [vmem:[%s4 + $0x8] sm:$0xff] %v690
    %810 = vst [vmem:[%s4 + $0x10] sm:$0xff] %v695
    %811 = vst [vmem:[%s4 + $0x18] sm:$0xff] %v700
    %812 = vst [vmem:[%s4 + $0x20] sm:$0xff] %v705
    %813 = vst [vmem:[%s4 + $0x28] sm:$0xff] %v710
    %814 = vst [vmem:[%s4 + $0x30] sm:$0xff] %v715
    %815 = vst [vmem:[%s4 + $0x38] sm:$0xff] %v720
    %816 = vst [vmem:[%s4 + $0x40] sm:$0xff] %v725
    %817 = vst [vmem:[%s4 + $0x48] sm:$0xff] %v730
    %818 = vst [vmem:[%s4 + $0x50] sm:$0xff] %v735
    %819 = vst [vmem:[%s4 + $0x58] sm:$0xff] %v740
    %820 = vst [vmem:[%s4 + $0x60] sm:$0xff] %v745
    %821 = vst [vmem:[%s4 + $0x68] sm:$0xff] %v750
    %822 = vst [vmem:[%s4 + $0x70] sm:$0xff] %v755
    %823 = vst [vmem:[%s4 + $0x78] sm:$0xff] %v760
    %824 = vst [vmem:[%s4 + $0x80] sm:$0xff] %v765
    %825 = vst [vmem:[%s4 + $0x88] sm:$0xff] %v770
    %826 = vst [vmem:[%s4 + $0x90] sm:$0xff] %v775
    %827 = vst [vmem:[%s4 + $0x98] sm:$0xff] %v780
    %828 = vst [vmem:[%s4 + $0xa0] sm:$0xff] %v785
    %829 = vst [vmem:[%s4 + $0xa8] sm:$0xff] %v790
    %830 = vst [vmem:[%s4 + $0xb0] sm:$0xff] %v795
    %831 = vst [vmem:[%s4 + $0xb8] sm:$0xff] %v800
    %832 = vst [vmem:[%s4 + $0xc0] sm:$0xff] %v805
    // Predicated region
    $region22: #{_vfl_forward_jit.1} parent=1 // pred_check
      _
    $region23: #{_vfl_forward_jit.1} parent=1 // pred_check_branch
      %834 = sbr.rel (0) target = $region25
    $region24: #{_vfl_forward_jit.1} parent=1 // pred_region
      _
    $region25: #{_vfl_forward_jit.1} parent=1 // pred_fallthru
      _
    // Predicated region
    $region26: #{_vfl_forward_jit.1} parent=1 // pred_check
      _
    $region27: #{_vfl_forward_jit.1} parent=1 // pred_check_branch
      %836 = sbr.rel (0) target = $region29
    $region28: #{_vfl_forward_jit.1} parent=1 // pred_region
      _
    $region29: #{_vfl_forward_jit.1} parent=1 // pred_fallthru
      _
    %837 = vsyncpa [#allocation3], 1

</llo_original>
